<compile_context>
chip_gen: v6e
topology: v6e:2x2x1
jax: 0.10.0
libtpu: 0.0.40
codegen_flags: <defaults>
</compile_context>

<pallas_src>
import math

import jax
import jax.numpy as jnp
import numpy as np
from jax.experimental import pallas as pl
from jax.experimental.pallas import tpu as pltpu


# ----------------------------------------------------------------------------
# PE table (module __init__ equivalent)
# ----------------------------------------------------------------------------
def make_sinusoidal_pe(max_seq_length: int, d_model: int) -> jnp.ndarray:
    """Same construction as the PyTorch __init__ (deterministic, no params)."""
    position = jnp.arange(max_seq_length, dtype=jnp.float32)[:, None]          # (L, 1)
    div_term = jnp.exp(
        jnp.arange(0, d_model, 2, dtype=jnp.float32) * (-math.log(10000.0) / d_model)
    )                                                                           # (D/2,)
    angles = position * div_term                                                # (L, D/2)
    pe = jnp.zeros((max_seq_length, d_model), dtype=jnp.float32)
    pe = pe.at[:, 0::2].set(jnp.sin(angles))
    pe = pe.at[:, 1::2].set(jnp.cos(angles))
    return pe                                                                   # (L, D)


# ----------------------------------------------------------------------------
# Environment probes (cached)
# ----------------------------------------------------------------------------
_PRNG_OK = None          # does pltpu.prng_* lower in this environment?
_BUDGETS = None          # (target tile bytes per buffer, vmem_limit_bytes)


def _inkernel_prng_available() -> bool:
    """One-time probe: exercises exactly the PRNG ops the dropout kernel uses."""
    global _PRNG_OK
    if _PRNG_OK is None:
        def probe_kernel(o_ref):
            pltpu.prng_seed(0)
            bits = pltpu.prng_random_bits((8, 128))
            if bits.dtype != np.dtype("uint32"):
                bits = pltpu.bitcast(bits, jnp.uint32)
            o_ref[...] = bits

        try:
            out = pl.pallas_call(
                probe_kernel,
                out_shape=jax.ShapeDtypeStruct((8, 128), jnp.uint32),
            )()
            jax.block_until_ready(out)
            _PRNG_OK = True
        except Exception:
            _PRNG_OK = False
    return _PRNG_OK


def _vmem_budgets():
    """Generation-aware (target_tile_bytes, vmem_limit_bytes)."""
    global _BUDGETS
    if _BUDGETS is None:
        try:
            vmem_bytes = int(pltpu.get_tpu_info().vmem_capacity_bytes)
        except Exception:
            vmem_bytes = 64 << 20  # unknown -> assume the tightest (v7x-sized) VMEM
        if vmem_bytes > (96 << 20):
            # v5e / v6e: 128 MiB physical VMEM -> bigger tiles, generous limit.
            _BUDGETS = (6 << 20, 64 << 20)
        else:
            # v7x (64 MiB physical) or unknown: ~4 MiB tiles, <=40 MiB limit.
            _BUDGETS = (4 << 20, 40 << 20)
    return _BUDGETS


# ----------------------------------------------------------------------------
# Tile selection (sublane-padding aware)
# ----------------------------------------------------------------------------
def _choose_flat_tiles(B, SD, itemsize, target_bytes):
    """(tile_b, tile_sd) for the flattened (B, S*D) fallback view.

    tile_sd is a multiple of 128 (or full SD); tile_b is a multiple of 8 (or
    full B).  The per-buffer footprint is computed with tile_b rounded UP to 8
    sublanes (physical VMEM padding), so tiny-batch / long-sequence inputs do
    not overshoot the VMEM budget.
    """
    max_elems = max(8 * 128, target_bytes // itemsize)
    if B <= 8:
        tile_b = B
    else:
        by_budget = (max_elems // max(SD, 128)) // 8 * 8
        tile_b = max(8, min(by_budget, (B // 8) * 8))
    padded_b = -(-tile_b // 8) * 8
    sd_budget = max(128, (max_elems // padded_b) // 128 * 128)
    tile_sd = SD if SD <= sd_budget else sd_budget
    # Give the v7x megacore at least two parallel tiles when the split matters
    # (neutral on single-TensorCore v5e/v6e).
    if tile_sd == SD and tile_b >= B and SD >= 256 and B * SD * itemsize >= (1 << 20):
        tile_sd = max(128, (SD // 2) // 128 * 128)
    return tile_b, tile_sd


def _choose_row_tiles(B, S, D, itemsize, target_bytes):
    """Row-tile count for the (B*S, D) view: a multiple of 8 that divides S."""
    max_rows = max(8, (target_bytes // itemsize) // D)
    total_rows = B * S
    if total_rows >= 16:
        # leave >=2 grid steps for megacore sharding / pipelining
        max_rows = min(max_rows, max(8, total_rows // 2))
    tile_rows = 8
    for cand in range(8, S + 1, 8):
        if S % cand == 0 and cand <= max_rows:
            tile_rows = cand
    return tile_rows


# ----------------------------------------------------------------------------
# Kernels
# ----------------------------------------------------------------------------
def _make_kernel(dropout, grid_rank, seed=0, threshold=0, scale=1.0):
    """dropout in {None, "prng", "mask"}; PE add + (inverted) dropout."""

    if dropout is None:
        def kernel(x_ref, pe_ref, o_ref):
            o_ref[...] = x_ref[...] + pe_ref[...]
        return kernel

    if dropout == "mask":
        # Fallback path only (interpret / no in-kernel PRNG): mask already
        # holds {0, 1/(1-p)} in x's dtype.
        def kernel(x_ref, pe_ref, m_ref, o_ref):
            o_ref[...] = (x_ref[...] + pe_ref[...]) * m_ref[...]
        return kernel

    # dropout == "prng": in-kernel hardware PRNG, no mask streamed from HBM.
    def kernel(x_ref, pe_ref, o_ref):
        if grid_rank == 1:
            tile_id = pl.program_id(0)
        else:
            tile_id = pl.program_id(0) * pl.num_programs(1) + pl.program_id(1)
        pltpu.prng_seed(seed + tile_id)                       # distinct per tile
        bits = pltpu.prng_random_bits(o_ref.shape)
        if bits.dtype != np.dtype("uint32"):
            bits = pltpu.bitcast(bits, jnp.uint32)
        keep = (bits < jnp.asarray(threshold, dtype=jnp.uint32)).astype(o_ref.dtype)
        y = (x_ref[...] + pe_ref[...]) * keep
        o_ref[...] = y * jnp.asarray(scale, o_ref.dtype)
    return kernel


# ----------------------------------------------------------------------------
# Wrapper (module forward)
# ----------------------------------------------------------------------------
def positional_encoding(x, pe_table, *, dropout_p=0.1, training=False, seed=0,
                        donate_x=False):
    """x: (B, S, D) -> x + pe[:S] (with inverted dropout when training).

    `seed` must be varied by the caller across training steps (a fixed seed
    gives a fixed mask; and the RNG stream never matches torch's dropout).
    Set donate_x=True only if the caller no longer needs x (output aliases the
    input HBM buffer).
    """
    B, S, D = x.shape
    dtype = x.dtype
    itemsize = jnp.dtype(dtype).itemsize
    target_bytes, vmem_limit = _vmem_budgets()

    use_dropout = bool(training) and float(dropout_p) > 0.0
    keep_prob = max(0.0, 1.0 - float(dropout_p))
    scale = 0.0 if keep_prob <= 0.0 else 1.0 / keep_prob
    use_prng = use_dropout and _inkernel_prng_available()

    pe_slice = pe_table[:S, :].astype(dtype)                  # O(S*D) glue only

    if D % 128 == 0 and S % 8 == 0:
        # Preferred layout: (B*S, D) rows -> full 8-sublane vreg utilization
        # even for tiny batches, lane-dense full-width stores, PE tile reused
        # across batches via a modular block index.
        rows = B * S
        tile_rows = _choose_row_tiles(B, S, D, itemsize, target_bytes)
        s_blocks = S // tile_rows
        x2 = x.reshape(rows, D)
        pe2 = pe_slice                                        # (S, D)
        grid = (pl.cdiv(rows, tile_rows),)
        block = (tile_rows, D)
        x_index_map = lambda i: (i, 0)
        pe_spec = pl.BlockSpec((tile_rows, D), lambda i: (i % s_blocks, 0))
        mask_shape = (rows, D)
    else:
        # Fallback layout: flattened (B, S*D) lane-dense view.
        SD = S * D
        tile_b, tile_sd = _choose_flat_tiles(B, SD, itemsize, target_bytes)
        x2 = x.reshape(B, SD)
        pe2 = pe_slice.reshape(1, SD)
        # S*D tiles outermost / batch innermost: the PE block index is constant
        # along the inner axis, so the pipeline does not re-DMA it.
        grid = (pl.cdiv(SD, tile_sd), pl.cdiv(B, tile_b))
        block = (tile_b, tile_sd)
        x_index_map = lambda j, i: (i, j)
        pe_spec = pl.BlockSpec((1, tile_sd), lambda j, i: (0, j))
        mask_shape = (B, SD)

    x_spec = pl.BlockSpec(block, x_index_map)
    out_spec = pl.BlockSpec(block, x_index_map)

    operands = [x2, pe2]
    in_specs = [x_spec, pe_spec]
    n_elems = x2.size
    flops = n_elems
    bytes_accessed = 2 * n_elems * itemsize + pe2.size * itemsize

    if use_dropout and use_prng:
        threshold = min(int(round(keep_prob * float(1 << 32))), (1 << 32) - 1)
        kernel = _make_kernel("prng", len(grid), seed=int(seed),
                              threshold=threshold, scale=scale)
        flops += 2 * n_elems
    elif use_dropout:
        # Interpret/debug fallback only: host-generated inverted-dropout mask.
        # (On real TPU the PRNG path above avoids this extra HBM stream.)
        keep = jax.random.bernoulli(jax.random.PRNGKey(int(seed)),
                                    p=keep_prob, shape=mask_shape)
        mask = keep.astype(dtype) * jnp.asarray(scale, dtype=dtype)
        operands.append(mask)
        in_specs.append(pl.BlockSpec(block, x_index_map))
        kernel = _make_kernel("mask", len(grid))
        flops += n_elems
        bytes_accessed += n_elems * itemsize
    else:
        kernel = _make_kernel(None, len(grid))

    io_aliases = {0: 0} if donate_x else {}

    out2 = pl.pallas_call(
        kernel,
        out_shape=jax.ShapeDtypeStruct(x2.shape, dtype),
        grid=grid,
        in_specs=in_specs,
        out_specs=out_spec,
        input_output_aliases=io_aliases,
        compiler_params=pltpu.CompilerParams(
            dimension_semantics=("parallel",) * len(grid),
            vmem_limit_bytes=vmem_limit,
        ),
        cost_estimate=pl.CostEstimate(
            flops=int(flops), transcendentals=0, bytes_accessed=int(bytes_accessed)
        ),
    )(*operands)
    return out2.reshape(B, S, D)


# ----------------------------------------------------------------------------
# Self-test
# ----------------------------------------------------------------------------
def _check_dropout(y, ref, keep_prob):
    """Structural check valid for both the PRNG and host-mask dropout paths:
    every element is either 0 or (x+pe)/keep_prob, and the drop fraction is
    statistically plausible."""
    scale = 1.0 / keep_prob
    y = np.asarray(y)
    scaled = np.asarray(ref) * scale
    is_zero = np.abs(y) <= 1e-6
    is_kept = np.abs(y - scaled) <= 1e-4 * np.maximum(1.0, np.abs(scaled))
    assert np.all(is_zero | is_kept), "dropout output contains invalid values"
    drop_frac = float(np.mean(is_zero))
    assert 0.0 < drop_frac < 0.5, f"implausible drop fraction {drop_frac:.3f}"


if __name__ == "__main__":
    dropout_p = 0.1

    # 1) Generic flattened path (d_model not a multiple of 128): B=2, S=8, D=32.
    B, S, D = 2, 8, 32
    x = jax.random.normal(jax.random.PRNGKey(0), (B, S, D), dtype=jnp.float32)
    pe_table = make_sinusoidal_pe(64, D)

    y_eval = jax.block_until_ready(
        positional_encoding(x, pe_table, dropout_p=dropout_p, training=False)
    )
    ref = x + pe_table[:S][None, :, :]
    np.testing.assert_allclose(np.asarray(y_eval), np.asarray(ref),
                               rtol=1e-6, atol=1e-6)

    # 2) Training mode (inverted dropout) on the same path.
    y_train = jax.block_until_ready(
        positional_encoding(x, pe_table, dropout_p=dropout_p, training=True, seed=1234)
    )
    _check_dropout(y_train, ref, 1.0 - dropout_p)

    # 3) Lane-dense row path (d_model a multiple of 128): B=2, S=16, D=128.
    B2, S2, D2 = 2, 16, 128
    x2 = jax.random.normal(jax.random.PRNGKey(1), (B2, S2, D2), dtype=jnp.float32)
    pe_table2 = make_sinusoidal_pe(64, D2)

    y2 = jax.block_until_ready(
        positional_encoding(x2, pe_table2, dropout_p=dropout_p, training=False)
    )
    ref2 = x2 + pe_table2[:S2][None, :, :]
    np.testing.assert_allclose(np.asarray(y2), np.asarray(ref2),
                               rtol=1e-6, atol=1e-6)

    # 4) Training mode on the row path.
    y2t = jax.block_until_ready(
        positional_encoding(x2, pe_table2, dropout_p=dropout_p, training=True, seed=7)
    )
    _check_dropout(y2t, ref2, 1.0 - dropout_p)

    print("KERNEL_OK")
</pallas_src>

<mosaic_0001>
module attributes {stable_mosaic.version = 11 : i64} {
  func.func @kernel(%arg0: i32, %arg1: i32, %arg2: memref<2x256xf32, #tpu.memory_space<vmem>>, %arg3: memref<1x256xf32, #tpu.memory_space<vmem>>, %arg4: memref<2x256xf32, #tpu.memory_space<vmem>>) attributes {dimension_semantics = [#tpu.dimension_semantics<parallel>, #tpu.dimension_semantics<parallel>], iteration_bounds = array<i64: 1, 1>, scalar_prefetch = 0 : i64, scratch_operands = 0 : i64, tpu.core_type = #tpu.core_type<tc>, window_params = [{transform_indices = @transform_0, window_bounds = array<i64: 2, 256>}, {transform_indices = @transform_1, window_bounds = array<i64: 1, 256>}, {transform_indices = @transform_2, window_bounds = array<i64: 2, 256>}]} {
    %c0 = arith.constant 0 : index
    %c0_0 = arith.constant 0 : index
    %0 = vector.load %arg2[%c0, %c0_0] : memref<2x256xf32, #tpu.memory_space<vmem>>, vector<2x256xf32>
    %c0_1 = arith.constant 0 : index
    %c0_2 = arith.constant 0 : index
    %1 = vector.load %arg3[%c0_1, %c0_2] : memref<1x256xf32, #tpu.memory_space<vmem>>, vector<1x256xf32>
    %2 = vector.broadcast %1 : vector<1x256xf32> to vector<2x256xf32>
    %3 = arith.addf %0, %2 : vector<2x256xf32>
    %c0_3 = arith.constant 0 : index
    %c0_4 = arith.constant 0 : index
    %4 = vector.load %arg4[%c0_3, %c0_4] : memref<2x256xf32, #tpu.memory_space<vmem>>, vector<2x256xf32>
    tpu.vector_store %arg4[%c0_3, %c0_4], %3 {strides = array<i32>} : memref<2x256xf32, #tpu.memory_space<vmem>>, vector<2x256xf32>,
    return
  }
  func.func @transform_0(%arg0: i32, %arg1: i32) -> (i32, i32) {
    %c0_i32 = arith.constant 0 : i32
    return %arg1, %arg0 : i32, i32
  }
  func.func @transform_1(%arg0: i32, %arg1: i32) -> (i32, i32) {
    %c0_i32 = arith.constant 0 : i32
    %c0_i32_0 = arith.constant 0 : i32
    return %c0_i32, %arg0 : i32, i32
  }
  func.func @transform_2(%arg0: i32, %arg1: i32) -> (i32, i32) {
    %c0_i32 = arith.constant 0 : i32
    return %arg1, %arg0 : i32, i32
  }
}

</mosaic_0001>

<llo_original>
// kernel: tpu_custom_call.1
$region0: #{tpu_custom_call.1}
  #allocation0 [shape = 'u32[]', space=smem, size = 0x4, offset = 0x4, fixed_abs, tag = 'smem constant byte address 0x4 - core index']
  #allocation1 [shape = 'u32[144,128]{1,0:T(1,128)}', space=vmem, size = 0x12000, scoped, tag = 'internal scratch']
  %s0 = inlined_call_operand.hbm [shape: f32[2,256], index: 0, kind: input, shape index: {}]
  %s1 = inlined_call_operand.hbm [shape: f32[1,256], index: 1, kind: input, shape index: {}]
  %s2 = inlined_call_operand.hbm [shape: f32[2,256], index: 2, kind: output, shape index: {}]
  %s3 = sld [smem:[#allocation0]]
  $region26: #{tpu_custom_call.1} parent=0
    _
  %s5 = ssub.s32 1, %s3
  %s6 = scalar_select 0, %s5, %s3
  $region1: #{tpu_custom_call.1} parent=0
    #allocation2 [shape = 'u8[2048]{0}', space=vmem, size = 0x800, scoped, tag = 'input window, operand 0, single buffered']
    #allocation3 [shape = 's32[1]{0}', space=sflag, size = 0x4, scoped, tag = 'scoped memory for tpu_custom_call.1']
    #allocation4 [shape = 's32[1]{0}', space=sflag, size = 0x4, scoped, tag = 'scoped memory for tpu_custom_call.1']
    #allocation5 [shape = 'u8[1024]{0}', space=vmem, size = 0x400, scoped, tag = 'input window, operand 1, single buffered']
    #allocation6 [shape = 's32[1]{0}', space=sflag, size = 0x4, scoped, tag = 'scoped memory for tpu_custom_call.1']
    #allocation7 [shape = 'u8[2048]{0}', space=vmem, size = 0x800, scoped, tag = 'output window, operand 0, single buffered']
    %7 = vsyncpa [#allocation3], 0
    %8 = vsyncpa [#allocation6], 0
    %9 = vsyncpa [#allocation4], 0
    // Predicated region
    $region2: #{tpu_custom_call.1} parent=1 // pred_check
      _
    $region3: #{tpu_custom_call.1} parent=1 // pred_check_branch
      %11 = sbr.rel (0) target = $region5
    $region4: #{tpu_custom_call.1} parent=1 // pred_region
      %s13 = ssub.s32 64, 64
      %14 = vsyncadd [#allocation3], %s13
      %s16 = sshll.u32 [#allocation2], 4
      %s17 = int_to_ptr.vmem [resolvable:$true] %s16
      %19 = dma.hbm_to_vmem [thread:$0]  %s0, 64, %s17, [#allocation3]
    $region5: #{tpu_custom_call.1} parent=1 // pred_fallthru
      _
    // Predicated region
    $region6: #{tpu_custom_call.1} parent=1 // pred_check
      _
    $region7: #{tpu_custom_call.1} parent=1 // pred_check_branch
      %21 = sbr.rel (0) target = $region9
    $region8: #{tpu_custom_call.1} parent=1 // pred_region
      %s23 = ssub.s32 32, 32
      %24 = vsyncadd [#allocation6], %s23
      %s26 = sshll.u32 [#allocation5], 4
      %s27 = int_to_ptr.vmem [resolvable:$true] %s26
      %29 = dma.hbm_to_vmem [thread:$0]  %s1, 32, %s27, [#allocation6]
    $region9: #{tpu_custom_call.1} parent=1 // pred_fallthru
      _
    // Predicated region
    $region10: #{tpu_custom_call.1} parent=1 // pred_check
      _
    $region11: #{tpu_custom_call.1} parent=1 // pred_check_branch
      %31 = sbr.rel (0) target = $region13
    $region12: #{tpu_custom_call.1} parent=1 // pred_region
      %32 = dma.done [#allocation3], 64
    $region13: #{tpu_custom_call.1} parent=1 // pred_fallthru
      _
    // Predicated region
    $region14: #{tpu_custom_call.1} parent=1 // pred_check
      _
    $region15: #{tpu_custom_call.1} parent=1 // pred_check_branch
      %34 = sbr.rel (0) target = $region17
    $region16: #{tpu_custom_call.1} parent=1 // pred_region
      %35 = dma.done [#allocation6], 32
    $region17: #{tpu_custom_call.1} parent=1 // pred_fallthru
      _
    %v36 = vld [vmem:[#allocation2] sm:$0xf]
    %v37 = vld [vmem:[#allocation5] sm:$0x3]
    %v39 = vlaneseq
    %v40 = vshrl.u32 %v39, 7
    %v41 = vsub.s32 0, %v40
    %v42 = vrot.slane %v37, %v41
    %v43 = vlaneseq
    %v44 = vshrl.u32 %v43, 7
    %v45 = vsub.s32 1, %v44
    %v46 = vrot.slane %v37, %v45
    %v47 = vcombine.low %v42, %v46
    %v49 = vunpack.c.l.s4 1983009808
    %v50 = vunpack.c.0.s8 %v49
    %v51 = vlaneseq
    %v52 = vshrl.u32 %v51, 7
    %v53 = vsub.s32 %v50, %v52
    %v54 = vrot.slane %v47, %v53
    %v56 = vadd.f32 %v36, %v54
    %57 = vst [vmem:[#allocation7] sm:$0xf] %v56
    // Predicated region
    $region18: #{tpu_custom_call.1} parent=1 // pred_check
      _
    $region19: #{tpu_custom_call.1} parent=1 // pred_check_branch
      %59 = sbr.rel (0) target = $region21
    $region20: #{tpu_custom_call.1} parent=1 // pred_region
      %s61 = ssub.s32 64, 64
      %62 = vsyncadd [#allocation4], %s61
      %s64 = sshll.u32 [#allocation7], 4
      %s65 = int_to_ptr.vmem [resolvable:$true] %s64
      %67 = dma.vmem_to_hbm [thread:$0]  %s65, 64, %s2, [#allocation4]
    $region21: #{tpu_custom_call.1} parent=1 // pred_fallthru
      _
    // Predicated region
    $region22: #{tpu_custom_call.1} parent=1 // pred_check
      _
    $region23: #{tpu_custom_call.1} parent=1 // pred_check_branch
      %69 = sbr.rel (0) target = $region25
    $region24: #{tpu_custom_call.1} parent=1 // pred_region
      %70 = dma.done [#allocation4], 64
    $region25: #{tpu_custom_call.1} parent=1 // pred_fallthru
      _
    %71 = vsyncpa [#allocation3], 1
    %72 = vsyncpa [#allocation6], 1
    %73 = vsyncpa [#allocation4], 1

</llo_original>
